<compile_context>
chip_gen: v7x
topology: tpu7x:2x2x1
jax: 0.10.0
libtpu: 0.0.40
codegen_flags: <defaults>
</compile_context>

<pallas_src>
import jax
import jax.numpy as jnp
from jax.experimental import pallas as pl
from jax.experimental.pallas import tpu as pltpu


def _round_up(x: int, m: int) -> int:
    return (x + m - 1) // m * m


def _pairwise_loss_kernel(pred_ref, out_ref):
    # pred_ref: [TB, C] in the caller's dtype; upcast in-register (free VPU cast).
    pred = pred_ref[...].astype(jnp.float32)
    tb, c = pred.shape

    # Lane mask: lane 0 holds the positive score, lanes 1..C-1 the negatives.
    col = jax.lax.broadcasted_iota(jnp.int32, (tb, c), dimension=1)
    is_pos = col == 0

    # Per-row max over negatives (== global max up to softmax shift invariance;
    # removes cross-row coupling so the batch can be tiled, and avoids exp underflow).
    neg_or_ninf = jnp.where(is_pos, -jnp.inf, pred)                # [TB, C]
    row_max = jnp.max(neg_or_ninf, axis=1, keepdims=True)          # [TB, 1]

    # exp(-inf) == 0, so lane 0 drops out of both reductions automatically.
    e = jnp.exp(neg_or_ninf - row_max)                             # [TB, C]
    denom = jnp.sum(e, axis=1, keepdims=True)                      # [TB, 1]
    weighted = jnp.sum(pred * e, axis=1, keepdims=True)            # [TB, 1]
    # Fused normalization: NegAgg = sum(neg * e) / sum(e); rcp runs on the EUP slot.
    neg_agg = weighted * pl.reciprocal(denom, approx=True)         # [TB, 1]

    # Positive score via masked row-reduce (keeps everything lane-aligned).
    pos = jnp.sum(jnp.where(is_pos, pred, 0.0), axis=1, keepdims=True)  # [TB, 1]

    z = neg_agg - pos                                              # == -(Pos - NegAgg)
    # Numerically stable softplus: max(z, 0) + log1p(exp(-|z|))
    loss = jnp.maximum(z, 0.0) + jnp.log1p(jnp.exp(-jnp.abs(z)))
    out_ref[...] = loss


def _reference_pairwise_loss(prediction: jax.Array) -> jax.Array:
    """Pure-jnp reference, mirroring the PyTorch loss_pairwise exactly."""
    prediction = prediction.astype(jnp.float32)
    pos = prediction[:, 0]
    neg = prediction[:, 1:]
    sm = jax.nn.softmax(neg - jnp.max(neg), axis=1)
    neg_agg = jnp.sum(neg * sm, axis=1)
    z = -(pos - neg_agg)
    return jnp.maximum(z, 0.0) + jnp.log1p(jnp.exp(-jnp.abs(z)))


def pairwise_loss(prediction: jax.Array, *, force_pallas: bool = False) -> jax.Array:
    """prediction: [B, 1+N] scores (f32 or bf16). Returns Loss: [B] f32."""
    B, C = prediction.shape
    assert C >= 2, "need at least one positive and one negative score"
    itemsize = jnp.dtype(prediction.dtype).itemsize

    # Tiny inputs: pallas_call launch + per-step overhead dwarfs the work and
    # plain XLA lets the loss fuse into the surrounding graph.
    if not force_pallas and B * C * itemsize < 128 * 1024:
        return _reference_pairwise_loss(prediction)

    # Row tile: multiple of 8 sublanes, sized so the double-buffered input block
    # (2 * TB * C * itemsize) stays well under the default scoped-VMEM limit on
    # every generation (v5e 16 MiB, v6e 32 MiB, v7x 32/64 MiB).
    budget_bytes = 4 * 1024 * 1024
    tb = max(8, min(budget_bytes // max(1, C * itemsize), 1024))
    tb = (tb // 8) * 8
    tb = min(tb, _round_up(B, 8))

    grid = (pl.cdiv(B, tb),)
    out = pl.pallas_call(
        _pairwise_loss_kernel,
        out_shape=jax.ShapeDtypeStruct((B, 1), jnp.float32),
        grid=grid,
        in_specs=[pl.BlockSpec((tb, C), lambda i: (i, 0))],
        out_specs=pl.BlockSpec((tb, 1), lambda i: (i, 0)),
        compiler_params=pltpu.CompilerParams(
            dimension_semantics=("parallel",),
        ),
    )(prediction)  # NOTE: no wrapper-side f32 cast -> no extra HBM copy/traffic.
    return out[:, 0]


def loss_model_forward(prediction: jax.Array) -> jax.Array:
    """LossModel.forward: passthrough of the backbone's Prediction."""
    return prediction


if __name__ == "__main__":
    key = jax.random.PRNGKey(0)
    B, NUM_CAND = 8, 16          # 1 positive + 15 negatives per row
    prediction = jax.random.normal(key, (B, NUM_CAND), dtype=jnp.float32)

    # LossModel.forward (Pairwise loss_type): backbone prediction passthrough,
    # then the pairwise loss computed in the Pallas kernel.
    pred = loss_model_forward(prediction)

    # Exercise the Pallas kernel even at this tiny test size.
    loss = pairwise_loss(pred, force_pallas=True)
    loss = jax.block_until_ready(loss)

    ref = _reference_pairwise_loss(pred)
    assert loss.shape == (B,)
    # Slightly relaxed tolerance: approx EUP reciprocal in the fused softmax.
    assert jnp.allclose(loss, ref, atol=1e-3, rtol=1e-3), (loss, ref)

    # Default (auto) path skips Pallas for tiny inputs; must match exactly-ish.
    loss_auto = jax.block_until_ready(pairwise_loss(pred))
    assert jnp.allclose(loss_auto, ref, atol=1e-5, rtol=1e-5)

    print("KERNEL_OK")
</pallas_src>

<mosaic_0001>
module attributes {stable_mosaic.version = 11 : i64} {
  func.func @_pairwise_loss_kernel(%arg0: i32, %arg1: memref<8x16xf32, #tpu.memory_space<vmem>>, %arg2: memref<8x1xf32, #tpu.memory_space<vmem>>) attributes {dimension_semantics = [#tpu.dimension_semantics<parallel>], iteration_bounds = array<i64: 1>, scalar_prefetch = 0 : i64, scratch_operands = 0 : i64, tpu.core_type = #tpu.core_type<tc>, window_params = [{transform_indices = @transform_0, window_bounds = array<i64: 8, 16>}, {transform_indices = @transform_1, window_bounds = array<i64: 8, 1>}]} {
    %c0 = arith.constant 0 : index
    %c0_0 = arith.constant 0 : index
    %0 = vector.load %arg1[%c0, %c0_0] : memref<8x16xf32, #tpu.memory_space<vmem>>, vector<8x16xf32>
    %1 = tpu.iota {dimensions = array<i32: 1>} : vector<8x16xi32>
    %c0_i32 = arith.constant 0 : i32
    %2 = vector.broadcast %c0_i32 : i32 to vector<8x16xi32>
    %3 = arith.cmpi eq, %1, %2 : vector<8x16xi32>
    %cst = arith.constant 0xFF800000 : f32
    %4 = vector.broadcast %cst : f32 to vector<8x16xf32>
    %5 = arith.select %3, %4, %0 : vector<8x16xi1>, vector<8x16xf32>
    %cst_1 = arith.constant dense<0xFF800000> : vector<8xf32>
    %6 = vector.multi_reduction <maximumf>, %5, %cst_1 [1] : vector<8x16xf32> to vector<8xf32>
    %7 = vector.shape_cast %6 : vector<8xf32> to vector<8x1xf32>
    %8 = vector.broadcast %7 : vector<8x1xf32> to vector<8x16xf32>
    %9 = arith.subf %5, %8 : vector<8x16xf32>
    %10 = math.exp %9 : vector<8x16xf32>
    %cst_2 = arith.constant dense<0.000000e+00> : vector<8xf32>
    %11 = vector.multi_reduction <add>, %10, %cst_2 [1] : vector<8x16xf32> to vector<8xf32>
    %12 = vector.shape_cast %11 : vector<8xf32> to vector<8x1xf32>
    %13 = arith.mulf %0, %10 : vector<8x16xf32>
    %cst_3 = arith.constant dense<0.000000e+00> : vector<8xf32>
    %14 = vector.multi_reduction <add>, %13, %cst_3 [1] : vector<8x16xf32> to vector<8xf32>
    %15 = vector.shape_cast %14 : vector<8xf32> to vector<8x1xf32>
    %16 = tpu.reciprocal %12 {approx = true} : vector<8x1xf32> -> vector<8x1xf32>
    %17 = arith.mulf %15, %16 : vector<8x1xf32>
    %cst_4 = arith.constant 0.000000e+00 : f32
    %18 = vector.broadcast %cst_4 : f32 to vector<8x16xf32>
    %19 = arith.select %3, %0, %18 : vector<8x16xi1>, vector<8x16xf32>
    %cst_5 = arith.constant dense<0.000000e+00> : vector<8xf32>
    %20 = vector.multi_reduction <add>, %19, %cst_5 [1] : vector<8x16xf32> to vector<8xf32>
    %21 = vector.shape_cast %20 : vector<8xf32> to vector<8x1xf32>
    %22 = arith.subf %17, %21 : vector<8x1xf32>
    %cst_6 = arith.constant 0.000000e+00 : f32
    %23 = vector.broadcast %cst_6 : f32 to vector<8x1xf32>
    %24 = arith.maximumf %22, %23 : vector<8x1xf32>
    %25 = math.absf %22 : vector<8x1xf32>
    %cst_7 = arith.constant 0.000000e+00 : f32
    %26 = vector.broadcast %cst_7 : f32 to vector<8x1xf32>
    %27 = arith.subf %26, %25 : vector<8x1xf32>
    %28 = math.exp %27 : vector<8x1xf32>
    %29 = math.log1p %28 : vector<8x1xf32>
    %30 = arith.addf %24, %29 : vector<8x1xf32>
    %c0_8 = arith.constant 0 : index
    %c0_9 = arith.constant 0 : index
    %31 = vector.load %arg2[%c0_8, %c0_9] : memref<8x1xf32, #tpu.memory_space<vmem>>, vector<8x1xf32>
    tpu.vector_store %arg2[%c0_8, %c0_9], %30 {strides = array<i32>} : memref<8x1xf32, #tpu.memory_space<vmem>>, vector<8x1xf32>,
    return
  }
  func.func @transform_0(%arg0: i32) -> (i32, i32) {
    %c0_i32 = arith.constant 0 : i32
    %c0_i32_0 = arith.constant 0 : i32
    return %arg0, %c0_i32 : i32, i32
  }
  func.func @transform_1(%arg0: i32) -> (i32, i32) {
    %c0_i32 = arith.constant 0 : i32
    %c0_i32_0 = arith.constant 0 : i32
    return %arg0, %c0_i32 : i32, i32
  }
}

</mosaic_0001>

<llo_original>
// kernel: tpu_custom_call.1
$region0: #{tpu_custom_call.1}
  #allocation0 [shape = 'u32[]', space=smem, size = 0x4, offset = 0x4, fixed_abs, tag = 'smem constant byte address 0x4 - core index']
  #allocation1 [shape = 'u32[144,128]{1,0:T(1,128)}', space=vmem, size = 0x12000, scoped, tag = 'internal scratch']
  %s0 = inlined_call_operand.hbm [shape: f32[8,16], index: 0, kind: input, shape index: {}]
  %s1 = inlined_call_operand.vmem [shape: f32[8,1], index: 1, kind: output, shape index: {}]
  %s2 = sld [smem:[#allocation0]]
  $region18: #{tpu_custom_call.1} parent=0
    _
  %s4 = ssub.s32 1, %s2
  %s5 = scalar_select 0, %s4, %s2
  $region1: #{tpu_custom_call.1} parent=0
    #allocation2 [shape = 'u8[4096]{0}', space=vmem, size = 0x1000, scoped, tag = 'input window, operand 0, single buffered']
    #allocation3 [shape = 's32[1]{0}', space=sflag, size = 0x4, scoped, tag = 'scoped memory for tpu_custom_call.1']
    %6 = vsyncpa [#allocation3], 0
    // Predicated region
    $region2: #{tpu_custom_call.1} parent=1 // pred_check
      _
    $region3: #{tpu_custom_call.1} parent=1 // pred_check_branch
      %8 = sbr.rel (0) target = $region5
    $region4: #{tpu_custom_call.1} parent=1 // pred_region
      %s10 = ssub.s32 128, 128
      %11 = vsyncadd [#allocation3], %s10
      %s13 = sshll.u32 [#allocation2], 4
      %s14 = int_to_ptr.vmem [resolvable:$true] %s13
      %16 = dma.hbm_to_vmem [thread:$0]  %s0, 128, %s14, [#allocation3]
    $region5: #{tpu_custom_call.1} parent=1 // pred_fallthru
      _
    // Predicated region
    $region6: #{tpu_custom_call.1} parent=1 // pred_check
      _
    $region7: #{tpu_custom_call.1} parent=1 // pred_check_branch
      %18 = sbr.rel (0) target = $region9
    $region8: #{tpu_custom_call.1} parent=1 // pred_region
      %19 = dma.done [#allocation3], 128
    $region9: #{tpu_custom_call.1} parent=1 // pred_fallthru
      _
    %v20 = vld [vmem:[#allocation2] sm:$0xff]
    %v21 = vlaneseq
    %v22 = vand.u32 %v21, 127
    %vm23 = vcmp.eq.s32.totalorder %v22, 0
    %v24 = vsel %vm23, -inf, %v20
    %vm25 = vcmask 130048
    %v26 = vsel %vm25, %v24, -inf
    %27 = vmax.xlane.f32.xlu0 %v26
    %v28 = vpop.xlane.xlu0 %27
    %v29 = vsub.f32 %v24, %v28
    %v30 = vmul.f32 %v29, 1.442695
    %v31 = vpow.pop %v30
    %v32 = vsel %vm25, %v31, 0.0
    %33 = vadd.xlane.f32.xlu0 %v32
    %v34 = vpop.xlane.xlu0 %33
    %v35 = vmul.f32 %v20, %v31
    %v36 = vsel %vm25, %v35, 0.0
    %37 = vadd.xlane.f32.xlu0 %v36
    %v38 = vpop.xlane.xlu0 %37
    %v39 = vrcp.pop %v34
    %v40 = vmul.f32 %v38, %v39
    %v41 = vsel %vm23, %v20, 0.0
    %v42 = vsel %vm25, %v41, 0.0
    %43 = vadd.xlane.f32.xlu0 %v42
    %v44 = vpop.xlane.xlu0 %43
    %v45 = vsub.f32 %v40, %v44
    %v46 = vmax.f32 %v45, 0.0
    %v47 = vand.u32 2147483647, %v45
    %v48 = vsub.f32 0.0, %v47
    %v49 = vmul.f32 %v48, 1.442695
    %v50 = vpow.pop %v49
    %v51 = vadd.f32 %v50, 1.0
    %v52 = vlog2.pop %v51
    %v53 = vmul.f32 %v52, 0.6931472
    %v54 = vmul.f32 -0.5, %v50
    %v55 = vadd.f32 %v54, 1.0
    %v56 = vmul.f32 %v55, %v50
    %v57 = vand.u32 2147483647, %v50
    %vm58 = vcmp.lt.f32.partialorder %v57, 0.0004427343
    %v59 = vsel %vm58, %v56, %v53
    %v60 = vadd.f32 %v46, %v59
    %vm61 = vcmask 7168
    %62 = vst.msk [vmem:[%s1] sm:$0xff] %vm61, %v60
    // Predicated region
    $region10: #{tpu_custom_call.1} parent=1 // pred_check
      _
    $region11: #{tpu_custom_call.1} parent=1 // pred_check_branch
      %64 = sbr.rel (0) target = $region13
    $region12: #{tpu_custom_call.1} parent=1 // pred_region
      _
    $region13: #{tpu_custom_call.1} parent=1 // pred_fallthru
      _
    // Predicated region
    $region14: #{tpu_custom_call.1} parent=1 // pred_check
      _
    $region15: #{tpu_custom_call.1} parent=1 // pred_check_branch
      %66 = sbr.rel (0) target = $region17
    $region16: #{tpu_custom_call.1} parent=1 // pred_region
      _
    $region17: #{tpu_custom_call.1} parent=1 // pred_fallthru
      _
    %67 = vsyncpa [#allocation3], 1

</llo_original>
